<compile_context>
chip_gen: v6e
topology: v6e:2x2x1
jax: 0.10.0
libtpu: 0.0.40
codegen_flags: <defaults>
</compile_context>

<pallas_src>
import functools

import jax
import jax.numpy as jnp
from jax import lax
from jax.experimental import pallas as pl
from jax.experimental.pallas import tpu as pltpu


# ------------------------------ Pallas kernel -------------------------------
def _make_kernel(TH, W, cin, hidden, oup, identity, dot_dtype):
  half = hidden // 2
  S = TH * W  # lane extent of one row strip (spatial-on-lanes)

  def kernel(xc_ref, ht_ref, hb_ref, m_ref,
             w1_ref, b1_ref, wm_ref, bm_ref, w3_ref, b3_ref, o_ref):
    xc = xc_ref[0]                                    # (cin, S) f32 centre strip

    # ---- conv1 (1x1 expand, BN1 folded) + ReLU6 ----
    h = jnp.clip(
        jnp.dot(w1_ref[...], xc.astype(dot_dtype),
                preferred_element_type=jnp.float32) + b1_ref[...],
        0.0, 6.0)                                      # (hidden, S) f32
    h1 = h[:half]                                      # horizontal-branch channels
    h2 = h[half:]                                      # vertical-branch channels

    # ---- six 3-tap operands (all f32; cast once at the dot) ----
    m = m_ref[...]                                     # (2, S) constant edge masks
    tap_l = pltpu.roll(h1, 1, axis=1) * m[0:1]         # h1[:, w-1], 0 at w == 0
    tap_r = pltpu.roll(h1, S - 1, axis=1) * m[1:2]     # h1[:, w+1], 0 at w == W-1

    h2t = ht_ref[0, 0]                                 # (half, W) conv1(row above)
    h2b = hb_ref[0, 0]                                 # (half, W) conv1(row below)
    if TH > 1:
      tap_u = jnp.concatenate([h2t, h2[:, :S - W]], axis=1)   # h2[:, row-1]
      tap_d = jnp.concatenate([h2[:, W:], h2b], axis=1)       # h2[:, row+1]
    else:
      tap_u, tap_d = h2t, h2b

    taps = jnp.concatenate([tap_l, h1, tap_r, tap_u, h2, tap_d], axis=0)

    # ---- conv2_h + conv2_v as ONE block-diagonal matmul + BN2 + ReLU6 ----
    o12 = jnp.clip(
        jnp.dot(wm_ref[...], taps.astype(dot_dtype),
                preferred_element_type=jnp.float32) + bm_ref[...],
        0.0, 6.0)                                      # (hidden, S) = [o1; o2]

    # ---- conv3 (1x1 project) + BN3 (+ residual) ----
    out = jnp.dot(w3_ref[...], o12.astype(dot_dtype),
                  preferred_element_type=jnp.float32) + b3_ref[...]
    if identity:
      out = out + xc
    o_ref[0] = out.astype(o_ref.dtype)

  return kernel


# --------------------------------- helpers ----------------------------------
def _fold_bn(gamma, beta, mean, var, eps=1e-5):
  scale = gamma / jnp.sqrt(var + eps)
  bias = beta - mean * scale
  return scale, bias


def _vmem_capacity_bytes():
  try:
    cap = int(getattr(pltpu.get_tpu_info(), "vmem_capacity_bytes"))
    if cap > 0:
      return cap
  except Exception:
    pass
  return 64 << 20   # conservative (v7x-sized) default


def _pick_row_tile(H, W, hidden, n_batch, vmem_cap):
  """Largest lane-dense row strip (TH | H, (TH*W) % 128 == 0) whose per-step
  working set fits a generation-aware VMEM budget.  On 2-TC parts (v7x-sized
  VMEM) additionally make sure the 'parallel' grid has >= 2 iterations."""
  budget = (vmem_cap * 3) // 8
  per_step = lambda th: 10 * hidden * th * W * 4   # conservative live-slab bytes
  cands = [th for th in range(1, H + 1)
           if H % th == 0 and (th * W) % 128 == 0 and per_step(th) <= budget]
  if not cands:
    if per_step(H) > budget:
      raise NotImplementedError(
          "TODO(synk): image needs a manual halo-DMA path (no lane-dense row "
          "split fits VMEM)")
    return H   # whole-image strip (block == full dim is always legal)
  pick = max(cands)
  two_core = vmem_cap <= (64 << 20)          # v7x-like: 2 TensorCores
  if two_core and n_batch * (H // pick) < 2:
    multi = [th for th in cands if n_batch * (H // th) >= 2]
    if multi:
      even = [th for th in multi if (n_batch * (H // th)) % 2 == 0]
      pick = max(even) if even else max(multi)
  return pick


# --------------------------------- wrapper ----------------------------------
def inverted_residual_half(x_nchw, params, stride, expand_ratio, *,
                           dot_dtype=jnp.bfloat16, row_tile=None):
  """x_nchw: (N, inp, H, W) f32.  params: torch-layout weights + BN stats."""
  assert stride == 1, "TODO(synk): stride == 2 path not implemented"
  assert expand_ratio != 1, "TODO(synk): expand_ratio == 1 path not implemented"

  N, cin, H, W = x_nchw.shape
  W1, Wh, Wv, W3 = params["W1"], params["Wh"], params["Wv"], params["W3"]
  hidden = W1.shape[0]
  assert hidden % 2 == 0, "hidden_dim must be even for the channel split"
  half = hidden // 2
  oup = W3.shape[0]
  identity = (stride == 1 and cin == oup)

  # ---- fold BN scales into conv weights (biases stay in-kernel) ----
  s1, b1 = _fold_bn(*params["bn1"])
  sh, bh = _fold_bn(*params["bn2h"])
  sv, bv = _fold_bn(*params["bn2v"])
  s3, b3 = _fold_bn(*params["bn3"])
  w1f = W1[:, :, 0, 0] * s1[:, None]                                           # (hidden, cin)
  whf = jnp.concatenate([Wh[:, :, 0, k] for k in range(3)], axis=1) * sh[:, None]
  wvf = jnp.concatenate([Wv[:, :, k, 0] for k in range(3)], axis=1) * sv[:, None]
  w3f = W3[:, :, 0, 0] * s3[:, None]                                           # (oup, hidden)
  zblk = jnp.zeros((half, 3 * half), jnp.float32)
  wmid = jnp.concatenate([jnp.concatenate([whf, zblk], axis=1),
                          jnp.concatenate([zblk, wvf], axis=1)], axis=0)       # (hidden, 6*half)
  bmid = jnp.concatenate([bh, bv])

  # Low-precision MXU operands: weights cast once here, activations at the dots.
  w1c = w1f.astype(dot_dtype)
  wmc = wmid.astype(dot_dtype)
  w3c = w3f.astype(dot_dtype)
  b1c, bmc, b3c = b1[:, None], bmid[:, None], b3[:, None]

  # ---- tiling (generation-aware) ----
  vmem_cap = _vmem_capacity_bytes()
  if row_tile is None:
    TH = _pick_row_tile(H, W, hidden, N, vmem_cap)
  else:
    assert H % row_tile == 0 and (row_tile == H or (row_tile * W) % 128 == 0)
    TH = row_tile
  NT = H // TH
  S = TH * W

  # ---- conv1(+BN1+ReLU6) of the +/-1 halo rows, once, in XLA ----
  # Zeros at the image boundary reproduce conv2_v's zero padding, so the kernel
  # needs no skinny per-strip matmuls and no boundary flags.
  w1v, b1v = w1f[half:], b1[half:]

  def conv1_rows(rows):                     # (N, cin, R, W) -> (N, R, half, W)
    hr = jnp.einsum("oc,ncrw->norw", w1v, rows,
                    precision=lax.Precision.HIGHEST)
    hr = jnp.clip(hr + b1v[None, :, None, None], 0.0, 6.0)
    return jnp.transpose(hr, (0, 2, 1, 3))

  zhalo = jnp.zeros((N, 1, half, W), jnp.float32)
  if NT > 1:
    top_idx = jnp.array([i * TH - 1 for i in range(1, NT)])
    bot_idx = jnp.array([(i + 1) * TH for i in range(NT - 1)])
    h2_top = jnp.concatenate([zhalo, conv1_rows(x_nchw[:, :, top_idx, :])], axis=1)
    h2_bot = jnp.concatenate([conv1_rows(x_nchw[:, :, bot_idx, :]), zhalo], axis=1)
  else:
    h2_top, h2_bot = zhalo, zhalo

  # ---- constant left/right edge masks for the (1,3) conv ----
  col = jnp.arange(S, dtype=jnp.int32) % W
  masks = jnp.stack([(col >= 1), (col <= W - 2)]).astype(jnp.float32)          # (2, S)

  # Channels-on-sublanes / spatial-on-lanes: NCHW reshapes directly.
  x_flat = x_nchw.reshape(N, cin, H * W)

  kernel = _make_kernel(TH, W, cin, hidden, oup, identity, dot_dtype)
  const = lambda n, i: (0, 0)
  vmem_limit = int(min(max(32 << 20, (vmem_cap * 3) // 4), 100 << 20))

  out_flat = pl.pallas_call(
      kernel,
      out_shape=jax.ShapeDtypeStruct((N, oup, H * W), jnp.float32),
      grid_spec=pltpu.PrefetchScalarGridSpec(
          num_scalar_prefetch=0,
          grid=(N, NT),
          in_specs=[
              pl.BlockSpec((1, cin, S), lambda n, i: (n, 0, i)),         # centre strip
              pl.BlockSpec((1, 1, half, W), lambda n, i: (n, i, 0, 0)),  # conv1(row above)
              pl.BlockSpec((1, 1, half, W), lambda n, i: (n, i, 0, 0)),  # conv1(row below)
              pl.BlockSpec((2, S), const),                               # edge masks
              pl.BlockSpec((hidden, cin), const),                        # w1 (BN folded)
              pl.BlockSpec((hidden, 1), const),                          # b1
              pl.BlockSpec((hidden, 6 * half), const),                   # block-diag W_mid
              pl.BlockSpec((hidden, 1), const),                          # b_mid
              pl.BlockSpec((oup, hidden), const),                        # w3 (BN folded)
              pl.BlockSpec((oup, 1), const),                             # b3
          ],
          out_specs=pl.BlockSpec((1, oup, S), lambda n, i: (n, 0, i)),
      ),
      compiler_params=pltpu.CompilerParams(
          dimension_semantics=("parallel", "parallel"),
          vmem_limit_bytes=vmem_limit),
  )(x_flat, h2_top, h2_bot, masks, w1c, b1c, wmc, bmc, w3c, b3c)

  return out_flat.reshape(N, oup, H, W)


# ------------------------- pure-JAX reference (NCHW) -------------------------
def _bn_nchw(x, gamma, beta, mean, var, eps=1e-5):
  scale = gamma / jnp.sqrt(var + eps)
  bias = beta - mean * scale
  return x * scale[None, :, None, None] + bias[None, :, None, None]


def ref_forward(x, p, stride, identity):
  dn = ("NCHW", "OIHW", "NCHW")
  conv = functools.partial(lax.conv_general_dilated, dimension_numbers=dn,
                           precision=lax.Precision.HIGHEST)
  h = conv(x, p["W1"], (1, 1), "VALID")
  h = jnp.clip(_bn_nchw(h, *p["bn1"]), 0.0, 6.0)
  h1, h2 = jnp.split(h, 2, axis=1)
  o1 = conv(h1, p["Wh"], (stride, stride), ((0, 0), (1, 1)))
  o1 = jnp.clip(_bn_nchw(o1, *p["bn2h"]), 0.0, 6.0)
  o2 = conv(h2, p["Wv"], (stride, stride), ((1, 1), (0, 0)))
  o2 = jnp.clip(_bn_nchw(o2, *p["bn2v"]), 0.0, 6.0)
  o = jnp.concatenate([o1, o2], axis=1)
  o = _bn_nchw(conv(o, p["W3"], (1, 1), "VALID"), *p["bn3"])
  return x + o if identity else o


# ------------------------------ parameter setup ------------------------------
def init_params(key, inp, oup, expand_ratio):
  hidden = int(round(inp * expand_ratio))
  half = hidden // 2
  ks = jax.random.split(key, 8)

  def bn(k, c):
    k1, k2, k3, k4 = jax.random.split(k, 4)
    gamma = jax.random.uniform(k1, (c,), jnp.float32, 0.5, 1.5)
    beta = 0.1 * jax.random.normal(k2, (c,), jnp.float32)
    mean = 0.1 * jax.random.normal(k3, (c,), jnp.float32)
    var = jax.random.uniform(k4, (c,), jnp.float32, 0.5, 1.5)
    return gamma, beta, mean, var

  return dict(
      W1=0.1 * jax.random.normal(ks[0], (hidden, inp, 1, 1), jnp.float32),
      Wh=0.1 * jax.random.normal(ks[1], (half, half, 1, 3), jnp.float32),
      Wv=0.1 * jax.random.normal(ks[2], (half, half, 3, 1), jnp.float32),
      W3=0.1 * jax.random.normal(ks[3], (oup, hidden, 1, 1), jnp.float32),
      bn1=bn(ks[4], hidden), bn2h=bn(ks[5], half), bn2v=bn(ks[6], half),
      bn3=bn(ks[7], oup))


if __name__ == "__main__":
  N, inp, oup, H, W = 2, 8, 8, 16, 16
  stride, expand_ratio = 1, 4

  key = jax.random.PRNGKey(0)
  kx, kp = jax.random.split(key)
  x = jax.random.normal(kx, (N, inp, H, W), jnp.float32)
  params = init_params(kp, inp, oup, expand_ratio)

  identity = (stride == 1 and inp == oup)
  ref = jax.block_until_ready(ref_forward(x, params, stride, identity))
  assert ref.shape == (N, oup, H, W)

  # (1) exact-numerics path (f32 MXU inputs), forced 2-strip tiling so the
  #     cross-strip halo path is exercised regardless of the local VMEM size.
  out_a = jax.block_until_ready(inverted_residual_half(
      x, params, stride, expand_ratio, dot_dtype=jnp.float32, row_tile=8))
  err_a = float(jnp.max(jnp.abs(out_a - ref)))
  assert out_a.shape == ref.shape
  assert err_a < 5e-4, f"f32 / 2-strip mismatch vs reference: {err_a}"

  # (2) exact-numerics path with the generation-aware default tiling.
  out_b = jax.block_until_ready(inverted_residual_half(
      x, params, stride, expand_ratio, dot_dtype=jnp.float32))
  err_b = float(jnp.max(jnp.abs(out_b - ref)))
  assert err_b < 5e-4, f"f32 / default-tiling mismatch vs reference: {err_b}"

  # (3) fast path: bf16 MXU operands (f32 accumulation), default tiling.
  #     Loose gate only (structure is validated by the f32 runs above).
  out_c = jax.block_until_ready(inverted_residual_half(
      x, params, stride, expand_ratio))
  err_c = float(jnp.max(jnp.abs(out_c - ref)))
  assert err_c < 1e-1, f"bf16 mismatch vs reference: {err_c}"

  print("KERNEL_OK")
</pallas_src>

<mosaic_0001>
module attributes {stable_mosaic.version = 11 : i64} {
  func.func @kernel(%arg0: i32, %arg1: i32, %arg2: memref<1x8x128xf32, #tpu.memory_space<vmem>>, %arg3: memref<1x1x16x16xf32, #tpu.memory_space<vmem>>, %arg4: memref<1x1x16x16xf32, #tpu.memory_space<vmem>>, %arg5: memref<2x128xf32, #tpu.memory_space<vmem>>, %arg6: memref<32x8xf32, #tpu.memory_space<vmem>>, %arg7: memref<32x1xf32, #tpu.memory_space<vmem>>, %arg8: memref<32x96xf32, #tpu.memory_space<vmem>>, %arg9: memref<32x1xf32, #tpu.memory_space<vmem>>, %arg10: memref<8x32xf32, #tpu.memory_space<vmem>>, %arg11: memref<8x1xf32, #tpu.memory_space<vmem>>, %arg12: memref<1x8x128xf32, #tpu.memory_space<vmem>>) attributes {dimension_semantics = [#tpu.dimension_semantics<parallel>, #tpu.dimension_semantics<parallel>], iteration_bounds = array<i64: 2, 2>, scalar_prefetch = 0 : i64, scratch_operands = 0 : i64, tpu.core_type = #tpu.core_type<tc>, window_params = [{transform_indices = @transform_0, window_bounds = array<i64: 1, 8, 128>}, {transform_indices = @transform_1, window_bounds = array<i64: 1, 1, 16, 16>}, {transform_indices = @transform_2, window_bounds = array<i64: 1, 1, 16, 16>}, {pipeline_mode = #tpu.pipeline_mode<synchronous>, transform_indices = @transform_3, window_bounds = array<i64: 2, 128>}, {pipeline_mode = #tpu.pipeline_mode<synchronous>, transform_indices = @transform_4, window_bounds = array<i64: 32, 8>}, {pipeline_mode = #tpu.pipeline_mode<synchronous>, transform_indices = @transform_5, window_bounds = array<i64: 32, 1>}, {pipeline_mode = #tpu.pipeline_mode<synchronous>, transform_indices = @transform_6, window_bounds = array<i64: 32, 96>}, {pipeline_mode = #tpu.pipeline_mode<synchronous>, transform_indices = @transform_7, window_bounds = array<i64: 32, 1>}, {pipeline_mode = #tpu.pipeline_mode<synchronous>, transform_indices = @transform_8, window_bounds = array<i64: 8, 32>}, {pipeline_mode = #tpu.pipeline_mode<synchronous>, transform_indices = @transform_9, window_bounds = array<i64: 8, 1>}, {transform_indices = @transform_10, window_bounds = array<i64: 1, 8, 128>}]} {
    %c0 = arith.constant 0 : index
    %c0_0 = arith.constant 0 : index
    %c0_1 = arith.constant 0 : index
    %0 = vector.load %arg2[%c0, %c0_0, %c0_1] : memref<1x8x128xf32, #tpu.memory_space<vmem>>, vector<1x8x128xf32>
    %1 = vector.shape_cast %0 : vector<1x8x128xf32> to vector<8x128xf32>
    %c0_2 = arith.constant 0 : index
    %c0_3 = arith.constant 0 : index
    %2 = vector.load %arg6[%c0_2, %c0_3] : memref<32x8xf32, #tpu.memory_space<vmem>>, vector<32x8xf32>
    %cst = arith.constant dense<0.000000e+00> : vector<32x128xf32>
    %3 = tpu.matmul %2, %1, %cst {dimension_numbers = #tpu.dot_dimension_numbers<[1], [0], [0], [1], [0, 0, 1, 1], [], []>} : vector<32x8xf32>, vector<8x128xf32>, vector<32x128xf32> -> vector<32x128xf32>
    %c0_4 = arith.constant 0 : index
    %c0_5 = arith.constant 0 : index
    %4 = vector.load %arg7[%c0_4, %c0_5] : memref<32x1xf32, #tpu.memory_space<vmem>>, vector<32x1xf32>
    %5 = vector.broadcast %4 : vector<32x1xf32> to vector<32x128xf32>
    %6 = arith.addf %3, %5 : vector<32x128xf32>
    %cst_6 = arith.constant 0.000000e+00 : f32
    %cst_7 = arith.constant 6.000000e+00 : f32
    %7 = vector.broadcast %cst_6 : f32 to vector<32x128xf32>
    %8 = arith.maximumf %7, %6 : vector<32x128xf32>
    %9 = vector.broadcast %cst_7 : f32 to vector<32x128xf32>
    %10 = arith.minimumf %9, %8 : vector<32x128xf32>
    %11 = vector.extract_strided_slice %10 {offsets = [0, 0], sizes = [16, 128], strides = [1, 1]} : vector<32x128xf32> to vector<16x128xf32>
    %12 = vector.extract_strided_slice %10 {offsets = [16, 0], sizes = [16, 128], strides = [1, 1]} : vector<32x128xf32> to vector<16x128xf32>
    %c0_8 = arith.constant 0 : index
    %c0_9 = arith.constant 0 : index
    %13 = vector.load %arg5[%c0_8, %c0_9] : memref<2x128xf32, #tpu.memory_space<vmem>>, vector<2x128xf32>
    %c1_i32 = arith.constant 1 : i32
    %14 = tpu.dynamic_rotate %11 by %c1_i32 dim 1 : vector<16x128xf32>, i32 -> vector<16x128xf32>
    %15 = vector.extract_strided_slice %13 {offsets = [0, 0], sizes = [1, 128], strides = [1, 1]} : vector<2x128xf32> to vector<1x128xf32>
    %16 = vector.broadcast %15 : vector<1x128xf32> to vector<16x128xf32>
    %17 = arith.mulf %14, %16 : vector<16x128xf32>
    %c127_i32 = arith.constant 127 : i32
    %18 = tpu.dynamic_rotate %11 by %c127_i32 dim 1 : vector<16x128xf32>, i32 -> vector<16x128xf32>
    %19 = vector.extract_strided_slice %13 {offsets = [1, 0], sizes = [1, 128], strides = [1, 1]} : vector<2x128xf32> to vector<1x128xf32>
    %20 = vector.broadcast %19 : vector<1x128xf32> to vector<16x128xf32>
    %21 = arith.mulf %18, %20 : vector<16x128xf32>
    %c0_10 = arith.constant 0 : index
    %c0_11 = arith.constant 0 : index
    %c0_12 = arith.constant 0 : index
    %c0_13 = arith.constant 0 : index
    %22 = vector.load %arg3[%c0_10, %c0_11, %c0_12, %c0_13] : memref<1x1x16x16xf32, #tpu.memory_space<vmem>>, vector<1x1x16x16xf32>
    %23 = vector.shape_cast %22 : vector<1x1x16x16xf32> to vector<16x16xf32>
    %c0_14 = arith.constant 0 : index
    %c0_15 = arith.constant 0 : index
    %c0_16 = arith.constant 0 : index
    %c0_17 = arith.constant 0 : index
    %24 = vector.load %arg4[%c0_14, %c0_15, %c0_16, %c0_17] : memref<1x1x16x16xf32, #tpu.memory_space<vmem>>, vector<1x1x16x16xf32>
    %25 = vector.shape_cast %24 : vector<1x1x16x16xf32> to vector<16x16xf32>
    %26 = vector.extract_strided_slice %12 {offsets = [0, 0], sizes = [16, 112], strides = [1, 1]} : vector<16x128xf32> to vector<16x112xf32>
    %27 = tpu.concatenate %23, %26 in 1 : vector<16x16xf32>, vector<16x112xf32> -> vector<16x128xf32>
    %28 = vector.extract_strided_slice %12 {offsets = [0, 16], sizes = [16, 112], strides = [1, 1]} : vector<16x128xf32> to vector<16x112xf32>
    %29 = tpu.concatenate %28, %25 in 1 : vector<16x112xf32>, vector<16x16xf32> -> vector<16x128xf32>
    %30 = tpu.concatenate %17, %11, %21, %27, %12, %29 in 0 : vector<16x128xf32>, vector<16x128xf32>, vector<16x128xf32>, vector<16x128xf32>, vector<16x128xf32>, vector<16x128xf32> -> vector<96x128xf32>
    %c0_18 = arith.constant 0 : index
    %c0_19 = arith.constant 0 : index
    %31 = vector.load %arg8[%c0_18, %c0_19] : memref<32x96xf32, #tpu.memory_space<vmem>>, vector<32x96xf32>
    %cst_20 = arith.constant dense<0.000000e+00> : vector<32x128xf32>
    %32 = tpu.matmul %31, %30, %cst_20 {dimension_numbers = #tpu.dot_dimension_numbers<[1], [0], [0], [1], [0, 0, 1, 1], [], []>} : vector<32x96xf32>, vector<96x128xf32>, vector<32x128xf32> -> vector<32x128xf32>
    %c0_21 = arith.constant 0 : index
    %c0_22 = arith.constant 0 : index
    %33 = vector.load %arg9[%c0_21, %c0_22] : memref<32x1xf32, #tpu.memory_space<vmem>>, vector<32x1xf32>
    %34 = vector.broadcast %33 : vector<32x1xf32> to vector<32x128xf32>
    %35 = arith.addf %32, %34 : vector<32x128xf32>
    %cst_23 = arith.constant 0.000000e+00 : f32
    %cst_24 = arith.constant 6.000000e+00 : f32
    %36 = vector.broadcast %cst_23 : f32 to vector<32x128xf32>
    %37 = arith.maximumf %36, %35 : vector<32x128xf32>
    %38 = vector.broadcast %cst_24 : f32 to vector<32x128xf32>
    %39 = arith.minimumf %38, %37 : vector<32x128xf32>
    %c0_25 = arith.constant 0 : index
    %c0_26 = arith.constant 0 : index
    %40 = vector.load %arg10[%c0_25, %c0_26] : memref<8x32xf32, #tpu.memory_space<vmem>>, vector<8x32xf32>
    %cst_27 = arith.constant dense<0.000000e+00> : vector<8x128xf32>
    %41 = tpu.matmul %40, %39, %cst_27 {dimension_numbers = #tpu.dot_dimension_numbers<[1], [0], [0], [1], [0, 0, 1, 1], [], []>} : vector<8x32xf32>, vector<32x128xf32>, vector<8x128xf32> -> vector<8x128xf32>
    %c0_28 = arith.constant 0 : index
    %c0_29 = arith.constant 0 : index
    %42 = vector.load %arg11[%c0_28, %c0_29] : memref<8x1xf32, #tpu.memory_space<vmem>>, vector<8x1xf32>
    %43 = vector.broadcast %42 : vector<8x1xf32> to vector<8x128xf32>
    %44 = arith.addf %41, %43 : vector<8x128xf32>
    %45 = arith.addf %44, %1 : vector<8x128xf32>
    %c0_30 = arith.constant 0 : index
    %c0_31 = arith.constant 0 : index
    %c0_32 = arith.constant 0 : index
    %46 = vector.load %arg12[%c0_30, %c0_31, %c0_32] : memref<1x8x128xf32, #tpu.memory_space<vmem>>, vector<1x8x128xf32>
    %47 = vector.shape_cast %46 : vector<1x8x128xf32> to vector<8x128xf32>
    %48 = vector.shape_cast %45 : vector<8x128xf32> to vector<1x8x128xf32>
    tpu.vector_store %arg12[%c0_30, %c0_31, %c0_32], %48 {strides = array<i32>} : memref<1x8x128xf32, #tpu.memory_space<vmem>>, vector<1x8x128xf32>,
    return
  }
  func.func @transform_0(%arg0: i32, %arg1: i32) -> (i32, i32, i32) {
    %c0_i32 = arith.constant 0 : i32
    %c0_i32_0 = arith.constant 0 : i32
    return %arg0, %c0_i32, %arg1 : i32, i32, i32
  }
  func.func @transform_1(%arg0: i32, %arg1: i32) -> (i32, i32, i32, i32) {
    %c0_i32 = arith.constant 0 : i32
    %c0_i32_0 = arith.constant 0 : i32
    %c0_i32_1 = arith.constant 0 : i32
    return %arg0, %arg1, %c0_i32, %c0_i32_0 : i32, i32, i32, i32
  }
  func.func @transform_2(%arg0: i32, %arg1: i32) -> (i32, i32, i32, i32) {
    %c0_i32 = arith.constant 0 : i32
    %c0_i32_0 = arith.constant 0 : i32
    %c0_i32_1 = arith.constant 0 : i32
    return %arg0, %arg1, %c0_i32, %c0_i32_0 : i32, i32, i32, i32
  }
  func.func @transform_3(%arg0: i32, %arg1: i32) -> (i32, i32) {
    %c0_i32 = arith.constant 0 : i32
    %c0_i32_0 = arith.constant 0 : i32
    %c0_i32_1 = arith.constant 0 : i32
    return %c0_i32, %c0_i32_0 : i32, i32
  }
  func.func @transform_4(%arg0: i32, %arg1: i32) -> (i32, i32) {
    %c0_i32 = arith.constant 0 : i32
    %c0_i32_0 = arith.constant 0 : i32
    %c0_i32_1 = arith.constant 0 : i32
    return %c0_i32, %c0_i32_0 : i32, i32
  }
  func.func @transform_5(%arg0: i32, %arg1: i32) -> (i32, i32) {
    %c0_i32 = arith.constant 0 : i32
    %c0_i32_0 = arith.constant 0 : i32
    %c0_i32_1 = arith.constant 0 : i32
    return %c0_i32, %c0_i32_0 : i32, i32
  }
  func.func @transform_6(%arg0: i32, %arg1: i32) -> (i32, i32) {
    %c0_i32 = arith.constant 0 : i32
    %c0_i32_0 = arith.constant 0 : i32
    %c0_i32_1 = arith.constant 0 : i32
    return %c0_i32, %c0_i32_0 : i32, i32
  }
  func.func @transform_7(%arg0: i32, %arg1: i32) -> (i32, i32) {
    %c0_i32 = arith.constant 0 : i32
    %c0_i32_0 = arith.constant 0 : i32
    %c0_i32_1 = arith.constant 0 : i32
    return %c0_i32, %c0_i32_0 : i32, i32
  }
  func.func @transform_8(%arg0: i32, %arg1: i32) -> (i32, i32) {
    %c0_i32 = arith.constant 0 : i32
    %c0_i32_0 = arith.constant 0 : i32
    %c0_i32_1 = arith.constant 0 : i32
    return %c0_i32, %c0_i32_0 : i32, i32
  }
  func.func @transform_9(%arg0: i32, %arg1: i32) -> (i32, i32) {
    %c0_i32 = arith.constant 0 : i32
    %c0_i32_0 = arith.constant 0 : i32
    %c0_i32_1 = arith.constant 0 : i32
    return %c0_i32, %c0_i32_0 : i32, i32
  }
  func.func @transform_10(%arg0: i32, %arg1: i32) -> (i32, i32, i32) {
    %c0_i32 = arith.constant 0 : i32
    %c0_i32_0 = arith.constant 0 : i32
    return %arg0, %c0_i32, %arg1 : i32, i32, i32
  }
}

</mosaic_0001>

<llo_original>
// kernel: tpu_custom_call.1
$region0: #{tpu_custom_call.1}
  #allocation0 [shape = 'u32[]', space=smem, size = 0x4, offset = 0x4, fixed_abs, tag = 'smem constant byte address 0x4 - core index']
  #allocation1 [shape = 'u32[144,128]{1,0:T(1,128)}', space=vmem, size = 0x12000, scoped, tag = 'internal scratch']
  %s0 = inlined_call_operand.vmem [shape: f32[2,8,256], index: 0, kind: input, shape index: {}]
  %s1 = inlined_call_operand.vmem [shape: f32[2,2,16,16], index: 1, kind: input, shape index: {}]
  %s2 = inlined_call_operand.hbm [shape: f32[2,2,16,16], index: 2, kind: input, shape index: {}]
  %s3 = inlined_call_operand.vmem [shape: f32[2,128], index: 3, kind: input, shape index: {}]
  %s4 = inlined_call_operand.vmem [shape: f32[32,8], index: 4, kind: input, shape index: {}]
  %s5 = inlined_call_operand.vmem [shape: f32[32,1], index: 5, kind: input, shape index: {}]
  %s6 = inlined_call_operand.hbm [shape: f32[32,96], index: 6, kind: input, shape index: {}]
  %s7 = inlined_call_operand.vmem [shape: f32[32,1], index: 7, kind: input, shape index: {}]
  %s8 = inlined_call_operand.vmem [shape: f32[8,32], index: 8, kind: input, shape index: {}]
  %s9 = inlined_call_operand.vmem [shape: f32[8,1], index: 9, kind: input, shape index: {}]
  %s10 = inlined_call_operand.hbm [shape: f32[2,8,256], index: 10, kind: output, shape index: {}]
  %s11 = sld [smem:[#allocation0]]
  $region81: #{tpu_custom_call.1} parent=0
    _
  %s13 = ssub.s32 1, %s11
  %s14 = scalar_select 0, %s13, %s11
  $region1: #{tpu_custom_call.1} parent=0
    #allocation2 [shape = 'u8[16384]{0}', space=vmem, size = 0x4000, scoped, tag = 'input window, operand 2']
    #allocation3 [shape = 's32[2]{0}', space=sflag, size = 0x8, scoped, tag = 'scoped memory for tpu_custom_call.1']
    #allocation4 [shape = 's32[2]{0}', space=sflag, size = 0x8, scoped, tag = 'scoped memory for tpu_custom_call.1']
    #allocation5 [shape = 'u8[16384]{0}', space=vmem, size = 0x4000, scoped, tag = 'input window, operand 6, single buffered']
    #allocation6 [shape = 's32[1]{0}', space=sflag, size = 0x4, scoped, tag = 'scoped memory for tpu_custom_call.1']
    #allocation7 [shape = 'u8[8192]{0}', space=vmem, size = 0x2000, scoped, tag = 'output window, operand 0']
    %15 = vsyncpa [#allocation3], 0
    %s16 = scalar_lea.sflag [#allocation3], 1
    %17 = vsyncpa %s16, 0
    %18 = vsyncpa [#allocation6], 0
    %19 = vsyncpa [#allocation4], 0
    %s20 = scalar_lea.sflag [#allocation4], 1
    %21 = vsyncpa %s20, 0
    loop: start=0, step=1, limit=6
    $region2: #{tpu_custom_call.1} parent=1 // loop_pre_header
      _
    $region3: #{tpu_custom_call.1} parent=1 // loop_header
      %s23 = sphi 0, %s27
      %p24 = scmp.ge.s32.totalorder %s23, 6
      %s30 = sphi 0, %s42
      %s31 = sphi 0, %s38
      %s32 = sphi 0, %s30
      %s33 = sphi 0, %s31
      %s34 = sphi 0, %s32
      %s35 = sphi 0, %s33
      %s47 = sphi 0, %s49
      %s50 = sphi 0, %s47
      %s51 = sphi 0, %s50
      %s67 = sphi 0, %s51
      %s75 = sphi 0, %s77
      %s78 = sphi 0, %s75
      %s79 = sphi 0, %s78
      %s95 = sphi 0, %s79
      %s103 = sphi 0, %s105
      %s106 = sphi 0, %s103
      %s107 = sphi 0, %s106
      %s123 = sphi 0, %s107
      %s127 = sphi 0, %s127
      %s129 = sphi 0, %s127
      %s130 = sphi 0, %s129
      %s144 = sphi 0, %s130
      %s148 = sphi 0, %s148
      %s150 = sphi 0, %s148
      %s151 = sphi 0, %s150
      %s165 = sphi 0, %s151
      %s169 = sphi 0, %s169
      %s171 = sphi 0, %s169
      %s172 = sphi 0, %s171
      %s186 = sphi 0, %s172
      %s190 = sphi 0, %s190
      %s192 = sphi 0, %s190
      %s193 = sphi 0, %s192
      %s207 = sphi 0, %s193
      %s211 = sphi 0, %s211
      %s213 = sphi 0, %s211
      %s214 = sphi 0, %s213
      %s228 = sphi 0, %s214
      %s232 = sphi 0, %s232
      %s234 = sphi 0, %s232
      %s235 = sphi 0, %s234
      %s249 = sphi 0, %s235
      %s253 = sphi 0, %s253
      %s255 = sphi 0, %s253
      %s256 = sphi 0, %s255
      %s270 = sphi 0, %s256
      %s278 = sphi 0, %s280
      %s281 = sphi 0, %s278
      %s282 = sphi 0, %s281
      %s298 = sphi 0, %s282
    $region4: #{tpu_custom_call.1} parent=1 // loop_header_branch
      %26 = sbr.rel (%p24) target = $region8
    $region5: #{tpu_custom_call.1} parent=1 // loop_body
      %s28 = ssub.s32 %s23, 1
      %s29 = ssub.s32 %s23, 2
      %s36 = sadd.s32 1, %s31
      %p37 = scmp.ge.s32.totalorder %s36, 2
      %s38 = scalar_select %p37, 0, %s36
      %s39 = sadd.s32 1, %s30
      %s40 = scalar_select %p37, %s39, %s30
      %p41 = scmp.ge.s32.totalorder %s40, 2
      %s42 = scalar_select %p41, 0, %s40
      %s43 = ssub.s32 %s30, %s42
      %s44 = ssub.s32 %s31, %s38
      %s45 = sor.u32 %s43, %s44
      %p46 = scmp.eq.s32.totalorder %s45, 0
      %s48 = sadd.s32 %s47, 1
      %s49 = scalar_select %p46, %s47, %s48
      %p52 = pneg %p46
      %p53 = scmp.eq.s32.totalorder %s23, 3
      %p54 = por %p52, %p53
      %p55 = scmp.ne.s32.totalorder %s47, %s50
      %p56 = scmp.eq.s32.totalorder %s23, 0
      %p57 = por %p55, %p56
      %p58 = scmp.ne.s32.totalorder %s47, %s50
      %p59 = scmp.eq.s32.totalorder %s28, 3
      %p60 = por %p58, %p59
      %p61 = scmp.ne.s32.totalorder %s50, %s51
      %p62 = scmp.eq.s32.totalorder %s28, 0
      %p63 = por %p61, %p62
      %p64 = scmp.ne.s32.totalorder %s50, %s51
      %p65 = scmp.eq.s32.totalorder %s29, 3
      %p66 = por %p64, %p65
      %p68 = scmp.ne.s32.totalorder %s51, %s67
      %p69 = scmp.eq.s32.totalorder %s29, 0
      %p70 = por %p68, %p69
      %s71 = ssub.s32 %s30, %s42
      %s72 = ssub.s32 %s31, %s38
      %s73 = sor.u32 %s71, %s72
      %p74 = scmp.eq.s32.totalorder %s73, 0
      %s76 = sadd.s32 %s75, 1
      %s77 = scalar_select %p74, %s75, %s76
      %p80 = pneg %p74
      %p81 = scmp.eq.s32.totalorder %s23, 3
      %p82 = por %p80, %p81
      %p83 = scmp.ne.s32.totalorder %s75, %s78
      %p84 = scmp.eq.s32.totalorder %s23, 0
      %p85 = por %p83, %p84
      %p86 = scmp.ne.s32.totalorder %s75, %s78
      %p87 = scmp.eq.s32.totalorder %s28, 3
      %p88 = por %p86, %p87
      %p89 = scmp.ne.s32.totalorder %s78, %s79
      %p90 = scmp.eq.s32.totalorder %s28, 0
      %p91 = por %p89, %p90
      %p92 = scmp.ne.s32.totalorder %s78, %s79
      %p93 = scmp.eq.s32.totalorder %s29, 3
      %p94 = por %p92, %p93
      %p96 = scmp.ne.s32.totalorder %s79, %s95
      %p97 = scmp.eq.s32.totalorder %s29, 0
      %p98 = por %p96, %p97
      %s99 = ssub.s32 %s30, %s42
      %s100 = ssub.s32 %s31, %s38
      %s101 = sor.u32 %s99, %s100
      %p102 = scmp.eq.s32.totalorder %s101, 0
      %s104 = sadd.s32 %s103, 1
      %s105 = scalar_select %p102, %s103, %s104
      %p108 = pneg %p102
      %p109 = scmp.eq.s32.totalorder %s23, 3
      %p110 = por %p108, %p109
      %p111 = scmp.ne.s32.totalorder %s103, %s106
      %p112 = scmp.eq.s32.totalorder %s23, 0
      %p113 = por %p111, %p112
      %p114 = scmp.ne.s32.totalorder %s103, %s106
      %p115 = scmp.eq.s32.totalorder %s28, 3
      %p116 = por %p114, %p115
      %p117 = scmp.ne.s32.totalorder %s106, %s107
      %p118 = scmp.eq.s32.totalorder %s28, 0
      %p119 = por %p117, %p118
      %p120 = scmp.ne.s32.totalorder %s106, %s107
      %p121 = scmp.eq.s32.totalorder %s29, 3
      %p122 = por %p120, %p121
      %p124 = scmp.ne.s32.totalorder %s107, %s123
      %p125 = scmp.eq.s32.totalorder %s29, 0
      %p126 = por %p124, %p125
      %s128 = sadd.s32 %s127, 1
      %p131 = scmp.eq.s32.totalorder %s23, 3
      %p132 = scmp.ne.s32.totalorder %s127, %s129
      %p133 = scmp.eq.s32.totalorder %s23, 0
      %p134 = por %p132, %p133
      %p135 = scmp.ne.s32.totalorder %s127, %s129
      %p136 = scmp.eq.s32.totalorder %s28, 3
      %p137 = por %p135, %p136
      %p138 = scmp.ne.s32.totalorder %s129, %s130
      %p139 = scmp.eq.s32.totalorder %s28, 0
      %p140 = por %p138, %p139
      %p141 = scmp.ne.s32.totalorder %s129, %s130
      %p142 = scmp.eq.s32.totalorder %s29, 3
      %p143 = por %p141, %p142
      %p145 = scmp.ne.s32.totalorder %s130, %s144
      %p146 = scmp.eq.s32.totalorder %s29, 0
      %p147 = por %p145, %p146
      %s149 = sadd.s32 %s148, 1
      %p152 = scmp.eq.s32.totalorder %s23, 3
      %p153 = scmp.ne.s32.totalorder %s148, %s150
      %p154 = scmp.eq.s32.totalorder %s23, 0
      %p155 = por %p153, %p154
      %p156 = scmp.ne.s32.totalorder %s148, %s150
      %p157 = scmp.eq.s32.totalorder %s28, 3
      %p158 = por %p156, %p157
      %p159 = scmp.ne.s32.totalorder %s150, %s151
      %p160 = scmp.eq.s32.totalorder %s28, 0
      %p161 = por %p159, %p160
      %p162 = scmp.ne.s32.totalorder %s150, %s151
      %p163 = scmp.eq.s32.totalorder %s29, 3
      %p164 = por %p162, %p163
      %p166 = scmp.ne.s32.totalorder %s151, %s165
      %p167 = scmp.eq.s32.totalorder %s29, 0
      %p168 = por %p166, %p167
      %s170 = sadd.s32 %s169, 1
      %p173 = scmp.eq.s32.totalorder %s23, 3
      %p174 = scmp.ne.s32.totalorder %s169, %s171
      %p175 = scmp.eq.s32.totalorder %s23, 0
      %p176 = por %p174, %p175
      %p177 = scmp.ne.s32.totalorder %s169, %s171
      %p178 = scmp.eq.s32.totalorder %s28, 3
      %p179 = por %p177, %p178
      %p180 = scmp.ne.s32.totalorder %s171, %s172
      %p181 = scmp.eq.s32.totalorder %s28, 0
      %p182 = por %p180, %p181
      %p183 = scmp.ne.s32.totalorder %s171, %s172
      %p184 = scmp.eq.s32.totalorder %s29, 3
      %p185 = por %p183, %p184
      %p187 = scmp.ne.s32.totalorder %s172, %s186
      %p188 = scmp.eq.s32.totalorder %s29, 0
      %p189 = por %p187, %p188
      %s191 = sadd.s32 %s190, 1
      %p194 = scmp.eq.s32.totalorder %s23, 3
      %p195 = scmp.ne.s32.totalorder %s190, %s192
      %p196 = scmp.eq.s32.totalorder %s23, 0
      %p197 = por %p195, %p196
      %p198 = scmp.ne.s32.totalorder %s190, %s192
      %p199 = scmp.eq.s32.totalorder %s28, 3
      %p200 = por %p198, %p199
      %p201 = scmp.ne.s32.totalorder %s192, %s193
      %p202 = scmp.eq.s32.totalorder %s28, 0
      %p203 = por %p201, %p202
      %p204 = scmp.ne.s32.totalorder %s192, %s193
      %p205 = scmp.eq.s32.totalorder %s29, 3
      %p206 = por %p204, %p205
      %p208 = scmp.ne.s32.totalorder %s193, %s207
      %p209 = scmp.eq.s32.totalorder %s29, 0
      %p210 = por %p208, %p209
      %s212 = sadd.s32 %s211, 1
      %p215 = scmp.eq.s32.totalorder %s23, 3
      %p216 = scmp.ne.s32.totalorder %s211, %s213
      %p217 = scmp.eq.s32.totalorder %s23, 0
      %p218 = por %p216, %p217
      %p219 = scmp.ne.s32.totalorder %s211, %s213
      %p220 = scmp.eq.s32.totalorder %s28, 3
      %p221 = por %p219, %p220
      %p222 = scmp.ne.s32.totalorder %s213, %s214
      %p223 = scmp.eq.s32.totalorder %s28, 0
      %p224 = por %p222, %p223
      %p225 = scmp.ne.s32.totalorder %s213, %s214
      %p226 = scmp.eq.s32.totalorder %s29, 3
      %p227 = por %p225, %p226
      %p229 = scmp.ne.s32.totalorder %s214, %s228
      %p230 = scmp.eq.s32.totalorder %s29, 0
      %p231 = por %p229, %p230
      %s233 = sadd.s32 %s232, 1
      %p236 = scmp.eq.s32.totalorder %s23, 3
      %p237 = scmp.ne.s32.totalorder %s232, %s234
      %p238 = scmp.eq.s32.totalorder %s23, 0
      %p239 = por %p237, %p238
      %p240 = scmp.ne.s32.totalorder %s232, %s234
      %p241 = scmp.eq.s32.totalorder %s28, 3
      %p242 = por %p240, %p241
      %p243 = scmp.ne.s32.totalorder %s234, %s235
      %p244 = scmp.eq.s32.totalorder %s28, 0
      %p245 = por %p243, %p244
      %p246 = scmp.ne.s32.totalorder %s234, %s235
      %p247 = scmp.eq.s32.totalorder %s29, 3
      %p248 = por %p246, %p247
      %p250 = scmp.ne.s32.totalorder %s235, %s249
      %p251 = scmp.eq.s32.totalorder %s29, 0
      %p252 = por %p250, %p251
      %s254 = sadd.s32 %s253, 1
      %p257 = scmp.eq.s32.totalorder %s23, 3
      %p258 = scmp.ne.s32.totalorder %s253, %s255
      %p259 = scmp.eq.s32.totalorder %s23, 0
      %p260 = por %p258, %p259
      %p261 = scmp.ne.s32.totalorder %s253, %s255
      %p262 = scmp.eq.s32.totalorder %s28, 3
      %p263 = por %p261, %p262
      %p264 = scmp.ne.s32.totalorder %s255, %s256
      %p265 = scmp.eq.s32.totalorder %s28, 0
      %p266 = por %p264, %p265
      %p267 = scmp.ne.s32.totalorder %s255, %s256
      %p268 = scmp.eq.s32.totalorder %s29, 3
      %p269 = por %p267, %p268
      %p271 = scmp.ne.s32.totalorder %s256, %s270
      %p272 = scmp.eq.s32.totalorder %s29, 0
      %p273 = por %p271, %p272
      %s274 = ssub.s32 %s30, %s42
      %s275 = ssub.s32 %s31, %s38
      %s276 = sor.u32 %s274, %s275
      %p277 = scmp.eq.s32.totalorder %s276, 0
      %s279 = sadd.s32 %s278, 1
      %s280 = scalar_select %p277, %s278, %s279
      %p283 = pneg %p277
      %p284 = scmp.eq.s32.totalorder %s23, 3
      %p285 = por %p283, %p284
      %p286 = scmp.ne.s32.totalorder %s278, %s281
      %p287 = scmp.eq.s32.totalorder %s23, 0
      %p288 = por %p286, %p287
      %p289 = scmp.ne.s32.totalorder %s278, %s281
      %p290 = scmp.eq.s32.totalorder %s28, 3
      %p291 = por %p289, %p290
      %p292 = scmp.ne.s32.totalorder %s281, %s282
      %p293 = scmp.eq.s32.totalorder %s28, 0
      %p294 = por %p292, %p293
      %p295 = scmp.ne.s32.totalorder %s281, %s282
      %p296 = scmp.eq.s32.totalorder %s29, 3
      %p297 = por %p295, %p296
      %p299 = scmp.ne.s32.totalorder %s282, %s298
      %p300 = scmp.eq.s32.totalorder %s29, 0
      %p301 = por %p299, %p300
      %p302 = scmp.le.s32.totalorder 1, %s23
      %p303 = scmp.lt.s32.totalorder %s23, 5
      %p304 = pnand %p302, %p303
      %p305 = pneg %p304
      // Predicated region
      $region9: #{tpu_custom_call.1} parent=5 // pred_check
        _
      $region10: #{tpu_custom_call.1} parent=5 // pred_check_branch
        %307 = sbr.rel (%p304) target = $region12
      $region11: #{tpu_custom_call.1} parent=5 // pred_region
        %s308 = ssub.s32 %s23, 1
        // Predicated region
        $region13: #{tpu_custom_call.1} parent=11 // pred_check
          %p309 = pneg %p140
        $region14: #{tpu_custom_call.1} parent=11 // pred_check_branch
          %311 = sbr.rel (%p309) target = $region16
        $region15: #{tpu_custom_call.1} parent=11 // pred_region
          _
        $region16: #{tpu_custom_call.1} parent=11 // pred_fallthru
          _
        // Predicated region
        $region17: #{tpu_custom_call.1} parent=11 // pred_check
          %p312 = pneg %p161
        $region18: #{tpu_custom_call.1} parent=11 // pred_check_branch
          %314 = sbr.rel (%p312) target = $region20
        $region19: #{tpu_custom_call.1} parent=11 // pred_region
          _
        $region20: #{tpu_custom_call.1} parent=11 // pred_fallthru
          _
        // Predicated region
        $region21: #{tpu_custom_call.1} parent=11 // pred_check
          %p315 = pneg %p182
        $region22: #{tpu_custom_call.1} parent=11 // pred_check_branch
          %317 = sbr.rel (%p315) target = $region24
        $region23: #{tpu_custom_call.1} parent=11 // pred_region
          _
        $region24: #{tpu_custom_call.1} parent=11 // pred_fallthru
          _
        // Predicated region
        $region25: #{tpu_custom_call.1} parent=11 // pred_check
          %p318 = pneg %p203
        $region26: #{tpu_custom_call.1} parent=11 // pred_check_branch
          %320 = sbr.rel (%p318) target = $region28
        $region27: #{tpu_custom_call.1} parent=11 // pred_region
          %s322 = ssub.s32 512, 512
          %323 = vsyncadd [#allocation6], %s322
          %s324 = sshll.u32 [#allocation5], 4
          %s325 = int_to_ptr.vmem [resolvable:$true] %s324
          %330 = dma.hbm_to_vmem [thread:$0]  %s6, 512, %s325, [#allocation6], 128, 128, 8
        $region28: #{tpu_custom_call.1} parent=11 // pred_fallthru
          _
        // Predicated region
        $region29: #{tpu_custom_call.1} parent=11 // pred_check
          %p331 = pneg %p224
        $region30: #{tpu_custom_call.1} parent=11 // pred_check_branch
          %333 = sbr.rel (%p331) target = $region32
        $region31: #{tpu_custom_call.1} parent=11 // pred_region
          _
        $region32: #{tpu_custom_call.1} parent=11 // pred_fallthru
          _
        // Predicated region
        $region33: #{tpu_custom_call.1} parent=11 // pred_check
          %p334 = pneg %p245
        $region34: #{tpu_custom_call.1} parent=11 // pred_check_branch
          %336 = sbr.rel (%p334) target = $region36
        $region35: #{tpu_custom_call.1} parent=11 // pred_region
          _
        $region36: #{tpu_custom_call.1} parent=11 // pred_fallthru
          _
        // Predicated region
        $region37: #{tpu_custom_call.1} parent=11 // pred_check
          %p337 = pneg %p266
        $region38: #{tpu_custom_call.1} parent=11 // pred_check_branch
          %339 = sbr.rel (%p337) target = $region40
        $region39: #{tpu_custom_call.1} parent=11 // pred_region
          _
        $region40: #{tpu_custom_call.1} parent=11 // pred_fallthru
          _
      $region12: #{tpu_custom_call.1} parent=5 // pred_fallthru
        _
      %p340 = scmp.lt.s32.totalorder %s23, 4
      // Predicated region
      $region41: #{tpu_custom_call.1} parent=5 // pred_check
        %p341 = pneg %p340
      $region42: #{tpu_custom_call.1} parent=5 // pred_check_branch
        %343 = sbr.rel (%p341) target = $region44
      $region43: #{tpu_custom_call.1} parent=5 // pred_region
        // Predicated region
        $region45: #{tpu_custom_call.1} parent=43 // pred_check
          %p344 = pneg %p57
        $region46: #{tpu_custom_call.1} parent=43 // pred_check_branch
          %346 = sbr.rel (%p344) target = $region48
        $region47: #{tpu_custom_call.1} parent=43 // pred_region
          %p347 = scmp.lt.s32.totalorder %s30, 1
          %s348 = scalar_select %p347, %s30, 1
          %p349 = scmp.lt.s32.totalorder %s31, 1
          %s350 = scalar_select %p349, %s31, 1
          %s351 = smul.addr %s348, 2
          %s352 = sadd.s32 %s350, %s351
          %s353 = smul.addr %s352, 8
          %s354 = scalar_lea.vmem %s0, %s353
        $region48: #{tpu_custom_call.1} parent=43 // pred_fallthru
          _
        // Predicated region
        $region49: #{tpu_custom_call.1} parent=43 // pred_check
          %p355 = pneg %p85
        $region50: #{tpu_custom_call.1} parent=43 // pred_check_branch
          %357 = sbr.rel (%p355) target = $region52
        $region51: #{tpu_custom_call.1} parent=43 // pred_region
          %p358 = scmp.lt.s32.totalorder %s30, 1
          %s359 = scalar_select %p358, %s30, 1
          %p360 = scmp.lt.s32.totalorder %s31, 1
          %s361 = scalar_select %p360, %s31, 1
          %s362 = smul.addr %s361, 2
          %s363 = smul.addr %s359, 4
          %s364 = sadd.s32 %s362, %s363
          %s365 = smul.addr %s364, 8
          %s366 = scalar_lea.vmem %s1, %s365
        $region52: #{tpu_custom_call.1} parent=43 // pred_fallthru
          _
        // Predicated region
        $region53: #{tpu_custom_call.1} parent=43 // pred_check
          %p367 = pneg %p113
        $region54: #{tpu_custom_call.1} parent=43 // pred_check_branch
          %369 = sbr.rel (%p367) target = $region56
        $region55: #{tpu_custom_call.1} parent=43 // pred_region
          %s370 = sand.u32 %s103, 1
          %s371 = scalar_lea.sflag [#allocation3], %s370
          %s372 = sand.u32 %s103, 1
          %s373 = smul.addr %s372, 16
          %s374 = scalar_lea.vmem [#allocation2], %s373
          %s376 = ssub.s32 256, 256
          %377 = vsyncadd %s371, %s376
          %s378 = smul.addr %s31, 2
          %s379 = smul.addr %s30, 4
          %s380 = sadd.s32 %s378, %s379
          %s381 = smul.addr %s380, 128
          %s382 = scalar_lea.hbm %s2, %s381
          %s383 = sshll.u32 %s374, 4
          %s384 = int_to_ptr.vmem [resolvable:$true] %s383
          %389 = dma.hbm_to_vmem [thread:$0]  %s382, 256, %s384, %s371, 128, 128, 8
        $region56: #{tpu_custom_call.1} parent=43 // pred_fallthru
          _
      $region44: #{tpu_custom_call.1} parent=5 // pred_fallthru
        _
      %p390 = scmp.le.s32.totalorder 1, %s23
      %p391 = scmp.lt.s32.totalorder %s23, 5
      %p392 = pnand %p390, %p391
      %p393 = pneg %p392
      // Predicated region
      $region57: #{tpu_custom_call.1} parent=5 // pred_check
        _
      $region58: #{tpu_custom_call.1} parent=5 // pred_check_branch
        %395 = sbr.rel (%p392) target = $region60
      $region59: #{tpu_custom_call.1} parent=5 // pred_region
        %s396 = ssub.s32 %s23, 1
        %s397 = sand.u32 %s106, 1
        %s398 = scalar_lea.sflag [#allocation3], %s397
        %s399 = sand.u32 %s106, 1
        %s400 = smul.addr %s399, 16
        %s401 = scalar_lea.vmem [#allocation2], %s400
        // Predicated region
        $region61: #{tpu_custom_call.1} parent=59 // pred_check
          %p402 = pneg %p119
        $region62: #{tpu_custom_call.1} parent=59 // pred_check_branch
          %404 = sbr.rel (%p402) target = $region64
        $region63: #{tpu_custom_call.1} parent=59 // pred_region
          %405 = dma.done %s398, 256
        $region64: #{tpu_custom_call.1} parent=59 // pred_fallthru
          _
        // Predicated region
        $region65: #{tpu_custom_call.1} parent=59 // pred_check
          %p406 = pneg %p203
        $region66: #{tpu_custom_call.1} parent=59 // pred_check_branch
          %408 = sbr.rel (%p406) target = $region68
        $region67: #{tpu_custom_call.1} parent=59 // pred_region
          %409 = dma.done [#allocation6], 512
        $region68: #{tpu_custom_call.1} parent=59 // pred_fallthru
          _
        %p410 = scmp.lt.s32.totalorder %s32, 1
        %s411 = scalar_select %p410, %s32, 1
        %p412 = scmp.lt.s32.totalorder %s33, 1
        %s413 = scalar_select %p412, %s33, 1
        %s414 = smul.addr %s411, 2
        %s415 = sadd.s32 %s413, %s414
        %s416 = smul.addr %s415, 8
        %s417 = scalar_lea.vmem %s0, %s416
        %p418 = pneg %p63
        %p419 = pneg %p60
        %p420 = scmp.lt.s32.totalorder %s32, 1
        %s421 = scalar_select %p420, %s32, 1
        %p422 = scmp.lt.s32.totalorder %s33, 1
        %s423 = scalar_select %p422, %s33, 1
        %s424 = smul.addr %s423, 2
        %s425 = smul.addr %s421, 4
        %s426 = sadd.s32 %s424, %s425
        %s427 = smul.addr %s426, 8
        %s428 = scalar_lea.vmem %s1, %s427
        %p429 = pneg %p91
        %p430 = pneg %p88
        %s431 = sand.u32 %s106, 1
        %s432 = scalar_lea.sflag [#allocation3], %s431
        %s433 = sand.u32 %s106, 1
        %s434 = smul.addr %s433, 16
        %s435 = scalar_lea.vmem [#allocation2], %s434
        %p436 = pneg %p119
        %p437 = pneg %p116
        %p438 = pneg %p140
        %p439 = pneg %p137
        %p440 = pneg %p161
        %p441 = pneg %p158
        %p442 = pneg %p182
        %p443 = pneg %p179
        %p444 = pneg %p203
        %p445 = pneg %p200
        %p446 = pneg %p224
        %p447 = pneg %p221
        %p448 = pneg %p245
        %p449 = pneg %p242
        %p450 = pneg %p266
        %p451 = pneg %p263
        %p452 = pneg %p294
        %p453 = pneg %p291
        %s454 = sand.u32 %s281, 1
        %s455 = scalar_lea.sflag [#allocation4], %s454
        %s456 = sand.u32 %s281, 1
        %s457 = smul.addr %s456, 8
        %s458 = scalar_lea.vmem [#allocation7], %s457
        %p459 = scmp.lt.s32.totalorder %s32, 1
        %s460 = scalar_select %p459, %s32, 1
        %p461 = scmp.lt.s32.totalorder %s33, 1
        %s462 = scalar_select %p461, %s33, 1
        %s463 = smul.addr %s460, 2
        %s464 = sadd.s32 %s462, %s463
        %s465 = smul.addr %s464, 8
        %s466 = scalar_lea.vmem %s0, %s465
        %p467 = scmp.lt.s32.totalorder %s32, 1
        %s468 = scalar_select %p467, %s32, 1
        %p469 = scmp.lt.s32.totalorder %s33, 1
        %s470 = scalar_select %p469, %s33, 1
        %s471 = smul.addr %s470, 2
        %s472 = smul.addr %s468, 4
        %s473 = sadd.s32 %s471, %s472
        %s474 = smul.addr %s473, 8
        %s475 = scalar_lea.vmem %s1, %s474
        %v476 = vld [vmem:[%s466] sm:$0xff]
        %v477 = vld [vmem:[%s4] sm:$0xff]
        %v478 = vld [vmem:[%s4 + $0x8] sm:$0xff]
        %v479 = vld [vmem:[%s4 + $0x10] sm:$0xff]
        %v480 = vld [vmem:[%s4 + $0x18] sm:$0xff]
        %v481 = vld [vmem:[%s5] sm:$0xff]
        %v482 = vld [vmem:[%s5 + $0x8] sm:$0xff]
        %v483 = vld [vmem:[%s5 + $0x10] sm:$0xff]
        %v484 = vld [vmem:[%s5 + $0x18] sm:$0xff]
        %486 = vset.pattern.permute.xlu0 0
        %487 = vperm.xlu0 %486, %v481
        %v488 = vpop.permute.xlu0 %487
        %491 = vset.pattern.permute.xlu0 0
        %492 = vperm.xlu0 %491, %v482
        %v493 = vpop.permute.xlu0 %492
        %496 = vset.pattern.permute.xlu0 0
        %497 = vperm.xlu0 %496, %v483
        %v498 = vpop.permute.xlu0 %497
        %501 = vset.pattern.permute.xlu0 0
        %502 = vperm.xlu0 %501, %v484
        %v503 = vpop.permute.xlu0 %502
        %vm505 = vcmask 64512
        %v507 = vsel %vm505, %v477, 0
        %v510 = vsel %vm505, %v478, 0
        %v513 = vsel %vm505, %v479, 0
        %v516 = vsel %vm505, %v480, 0
        %518 = vmatprep.subr.mxu0 0.0
        %519 = vmatpush1.msra.mxu0 0.0
        %520 = vmatprep.subr.mxu0 0.0
        %521 = vmatpush1.msra.mxu0 0.0
        %522 = vmatprep.subr.mxu0 0.0
        %523 = vmatpush1.msra.mxu0 0.0
        %524 = vmatprep.subr.mxu0 0.0
        %525 = vmatpush1.msra.mxu0 0.0
        %526 = vmatprep.subr.mxu0 0.0
        %527 = vmatpush1.msra.mxu0 0.0
        %528 = vmatprep.subr.mxu0 0.0
        %529 = vmatpush1.msra.mxu0 0.0
        %530 = vmatprep.subr.mxu0 0.0
        %531 = vmatpush1.msra.mxu0 0.0
        %532 = vmatprep.subr.mxu0 0.0
        %533 = vmatpush1.msra.mxu0 0.0
        %534 = vmatprep.subr.mxu0 0.0
        %535 = vmatpush1.msra.mxu0 0.0
        %536 = vmatprep.subr.mxu0 0.0
        %537 = vmatpush1.msra.mxu0 0.0
        %538 = vmatprep.subr.mxu0 0.0
        %539 = vmatpush1.msra.mxu0 0.0
        %540 = vmatprep.subr.mxu0 0.0
        %541 = vmatpush1.msra.mxu0 0.0
        %542 = vmatprep.subr.mxu0 0.0
        %543 = vmatpush1.msra.mxu0 0.0
        %544 = vmatprep.subr.mxu0 0.0
        %545 = vmatpush1.msra.mxu0 0.0
        %546 = vmatprep.subr.mxu0 0.0
        %547 = vmatpush1.msra.mxu0 0.0
        %548 = vmatprep.subr.mxu0 0.0
        %549 = vmatpush1.msra.mxu0 %v476
        %550 = vmatprep.subr.mxu0 0.0
        %551 = vmatpush2.msra.mxu0 0.0
        %552 = vmatprep.subr.mxu0 0.0
        %553 = vmatpush2.msra.mxu0 0.0
        %554 = vmatprep.subr.mxu0 0.0
        %555 = vmatpush2.msra.mxu0 0.0
        %556 = vmatprep.subr.mxu0 0.0
        %557 = vmatpush2.msra.mxu0 0.0
        %558 = vmatprep.subr.mxu0 0.0
        %559 = vmatpush2.msra.mxu0 0.0
        %560 = vmatprep.subr.mxu0 0.0
        %561 = vmatpush2.msra.mxu0 0.0
        %562 = vmatprep.subr.mxu0 0.0
        %563 = vmatpush2.msra.mxu0 0.0
        %564 = vmatprep.subr.mxu0 0.0
        %565 = vmatpush2.msra.mxu0 0.0
        %566 = vmatprep.subr.mxu0 0.0
        %567 = vmatpush2.msra.mxu0 0.0
        %568 = vmatprep.subr.mxu0 0.0
        %569 = vmatpush2.msra.mxu0 0.0
        %570 = vmatprep.subr.mxu0 0.0
        %571 = vmatpush2.msra.mxu0 0.0
        %572 = vmatprep.subr.mxu0 0.0
        %573 = vmatpush2.msra.mxu0 0.0
        %574 = vmatprep.subr.mxu0 0.0
        %575 = vmatpush2.msra.mxu0 0.0
        %576 = vmatprep.subr.mxu0 0.0
        %577 = vmatpush2.msra.mxu0 0.0
        %578 = vmatprep.subr.mxu0 0.0
        %579 = vmatpush2.msra.mxu0 0.0
        %580 = vmatprep.subr.mxu0 0.0
        %581 = vmatpush2.msra.mxu0 0.0
        %582 = vmatprep.mubr.f32.mxu0 0.0
        %583 = vmatmul.mubr.f32.gmra.mxu0 %v507
        %v584 = vpop.f32.mrf.mxu0
        %v585 = vadd.f32 %v488, %v584
        %v586 = vpop.f32.mrf.mxu0
        %587 = vmatprep.mubr.f32.mxu0 0.0
        %588 = vmatmul.mubr.f32.gmra.mxu0 %v510
        %v589 = vpop.f32.mrf.mxu0
        %v590 = vadd.f32 %v493, %v589
        %v591 = vpop.f32.mrf.mxu0
        %592 = vmatprep.mubr.f32.mxu0 0.0
        %593 = vmatmul.mubr.f32.gmra.mxu0 %v513
        %v594 = vpop.f32.mrf.mxu0
        %v595 = vadd.f32 %v498, %v594
        %v596 = vpop.f32.mrf.mxu0
        %597 = vmatprep.mubr.f32.mxu0 0.0
        %598 = vmatmul.mubr.f32.gmra.mxu0 %v516
        %v599 = vpop.f32.mrf.mxu0
        %v600 = vadd.f32 %v503, %v599
        %v601 = vpop.f32.mrf.mxu0
        %602 = vdwg.mxu0
        %v603 = vmax.f32 %v585, 0.0
        %v604 = vmax.f32 %v590, 0.0
        %v605 = vmax.f32 %v595, 0.0
        %v606 = vmax.f32 %v600, 0.0
        %v607 = vmin.f32 %v603, 6.0
        %v608 = vmin.f32 %v604, 6.0
        %v609 = vmin.f32 %v605, 6.0
        %v610 = vmin.f32 %v606, 6.0
        %v611 = vld [vmem:[%s3] sm:$0x3]
        %612 = vrot.lane.b32.xlu0 %v607, 1
        %v613 = vpop.permute.xlu0 %612
        %614 = vrot.lane.b32.xlu0 %v608, 1
        %v615 = vpop.permute.xlu0 %614
        %v616 = vlaneseq
        %v617 = vshrl.u32 %v616, 7
        %v618 = vsub.s32 0, %v617
        %v619 = vrot.slane %v611, %v618
        %v620 = vmul.f32 %v613, %v619
        %v621 = vmul.f32 %v615, %v619
        %622 = vrot.lane.b32.xlu0 %v607, 127
        %v623 = vpop.permute.xlu0 %622
        %624 = vrot.lane.b32.xlu0 %v608, 127
        %v625 = vpop.permute.xlu0 %624
        %v626 = vlaneseq
        %v627 = vshrl.u32 %v626, 7
        %v628 = vsub.s32 1, %v627
        %v629 = vrot.slane %v611, %v628
        %v630 = vmul.f32 %v623, %v629
        %v631 = vmul.f32 %v625, %v629
        %v632 = vld [vmem:[%s475] sm:$0xff]
        %v633 = vld [vmem:[%s475 + $0x8] sm:$0xff]
        %v634 = vld [vmem:[%s401] sm:$0xff]
        %v635 = vld [vmem:[%s401 + $0x8] sm:$0xff]
        %638 = vrot.lane.b32.xlu0 %v609, 16
        %v639 = vpop.permute.xlu0 %638
        %640 = vrot.lane.b32.xlu0 %v610, 16
        %v641 = vpop.permute.xlu0 %640
        %vm644 = vcmask 130048
        %v645 = vsel %vm644, %v632, %v639
        %v646 = vsel %vm644, %v633, %v641
        %647 = vrot.lane.b32.xlu0 %v609, 112
        %v648 = vpop.permute.xlu0 %647
        %649 = vrot.lane.b32.xlu0 %v610, 112
        %v650 = vpop.permute.xlu0 %649
        %655 = vrot.lane.b32.xlu0 %v634, 112
        %v656 = vpop.permute.xlu0 %655
        %657 = vrot.lane.b32.xlu0 %v635, 112
        %v658 = vpop.permute.xlu0 %657
        %vm661 = vcmask 916480
        %v662 = vsel %vm661, %v648, %v656
        %v663 = vsel %vm661, %v650, %v658
        %v664 = vld [vmem:[#allocation5] sm:$0xff]
        %v665 = vld [vmem:[#allocation5 + $0x8] sm:$0xff]
        %v666 = vld [vmem:[#allocation5 + $0x10] sm:$0xff]
        %v667 = vld [vmem:[#allocation5 + $0x18] sm:$0xff]
        %v668 = vld [vmem:[%s7] sm:$0xff]
        %v669 = vld [vmem:[%s7 + $0x8] sm:$0xff]
        %v670 = vld [vmem:[%s7 + $0x10] sm:$0xff]
        %v671 = vld [vmem:[%s7 + $0x18] sm:$0xff]
        %673 = vset.pattern.permute.xlu0 0
        %674 = vperm.xlu0 %673, %v668
        %v675 = vpop.permute.xlu0 %674
        %678 = vset.pattern.permute.xlu0 0
        %679 = vperm.xlu0 %678, %v669
        %v680 = vpop.permute.xlu0 %679
        %683 = vset.pattern.permute.xlu0 0
        %684 = vperm.xlu0 %683, %v670
        %v685 = vpop.permute.xlu0 %684
        %688 = vset.pattern.permute.xlu0 0
        %689 = vperm.xlu0 %688, %v671
        %v690 = vpop.permute.xlu0 %689
        %vm692 = vcmask 785408
        %v694 = vsel %vm692, %v664, 0
        %v697 = vsel %vm692, %v665, 0
        %v700 = vsel %vm692, %v666, 0
        %v703 = vsel %vm692, %v667, 0
        %705 = vmatprep.subr.mxu0 0.0
        %706 = vmatpush1.msra.mxu0 0.0
        %707 = vmatprep.subr.mxu0 0.0
        %708 = vmatpush1.msra.mxu0 0.0
        %709 = vmatprep.subr.mxu0 0.0
        %710 = vmatpush1.msra.mxu0 0.0
        %711 = vmatprep.subr.mxu0 0.0
        %712 = vmatpush1.msra.mxu0 0.0
        %713 = vmatprep.subr.mxu0 0.0
        %714 = vmatpush1.msra.mxu0 %v663
        %715 = vmatprep.subr.mxu0 0.0
        %716 = vmatpush1.msra.mxu0 %v662
        %717 = vmatprep.subr.mxu0 0.0
        %718 = vmatpush1.msra.mxu0 %v610
        %719 = vmatprep.subr.mxu0 0.0
        %720 = vmatpush1.msra.mxu0 %v609
        %721 = vmatprep.subr.mxu0 0.0
        %722 = vmatpush1.msra.mxu0 %v646
        %723 = vmatprep.subr.mxu0 0.0
        %724 = vmatpush1.msra.mxu0 %v645
        %725 = vmatprep.subr.mxu0 0.0
        %726 = vmatpush1.msra.mxu0 %v631
        %727 = vmatprep.subr.mxu0 0.0
        %728 = vmatpush1.msra.mxu0 %v630
        %729 = vmatprep.subr.mxu0 0.0
        %730 = vmatpush1.msra.mxu0 %v608
        %731 = vmatprep.subr.mxu0 0.0
        %732 = vmatpush1.msra.mxu0 %v607
        %733 = vmatprep.subr.mxu0 0.0
        %734 = vmatpush1.msra.mxu0 %v621
        %735 = vmatprep.subr.mxu0 0.0
        %736 = vmatpush1.msra.mxu0 %v620
        %737 = vmatprep.subr.mxu0 0.0
        %738 = vmatpush2.msra.mxu0 0.0
        %739 = vmatprep.subr.mxu0 0.0
        %740 = vmatpush2.msra.mxu0 0.0
        %741 = vmatprep.subr.mxu0 0.0
        %742 = vmatpush2.msra.mxu0 0.0
        %743 = vmatprep.subr.mxu0 0.0
        %744 = vmatpush2.msra.mxu0 0.0
        %745 = vmatprep.subr.mxu0 0.0
        %746 = vmatpush2.msra.mxu0 0.0
        %747 = vmatprep.subr.mxu0 0.0
        %748 = vmatpush2.msra.mxu0 0.0
        %749 = vmatprep.subr.mxu0 0.0
        %750 = vmatpush2.msra.mxu0 0.0
        %751 = vmatprep.subr.mxu0 0.0
        %752 = vmatpush2.msra.mxu0 0.0
        %753 = vmatprep.subr.mxu0 0.0
        %754 = vmatpush2.msra.mxu0 0.0
        %755 = vmatprep.subr.mxu0 0.0
        %756 = vmatpush2.msra.mxu0 0.0
        %757 = vmatprep.subr.mxu0 0.0
        %758 = vmatpush2.msra.mxu0 0.0
        %759 = vmatprep.subr.mxu0 0.0
        %760 = vmatpush2.msra.mxu0 0.0
        %761 = vmatprep.subr.mxu0 0.0
        %762 = vmatpush2.msra.mxu0 0.0
        %763 = vmatprep.subr.mxu0 0.0
        %764 = vmatpush2.msra.mxu0 0.0
        %765 = vmatprep.subr.mxu0 0.0
        %766 = vmatpush2.msra.mxu0 0.0
        %767 = vmatprep.subr.mxu0 0.0
        %768 = vmatpush2.msra.mxu0 0.0
        %769 = vmatprep.mubr.f32.mxu0 0.0
        %770 = vmatmul.mubr.f32.gmra.mxu0 %v694
        %v771 = vpop.f32.mrf.mxu0
        %v772 = vadd.f32 %v675, %v771
        %v773 = vpop.f32.mrf.mxu0
        %774 = vmatprep.mubr.f32.mxu0 0.0
        %775 = vmatmul.mubr.f32.gmra.mxu0 %v697
        %v776 = vpop.f32.mrf.mxu0
        %v777 = vadd.f32 %v680, %v776
        %v778 = vpop.f32.mrf.mxu0
        %779 = vmatprep.mubr.f32.mxu0 0.0
        %780 = vmatmul.mubr.f32.gmra.mxu0 %v700
        %v781 = vpop.f32.mrf.mxu0
        %v782 = vadd.f32 %v685, %v781
        %v783 = vpop.f32.mrf.mxu0
        %784 = vmatprep.mubr.f32.mxu0 0.0
        %785 = vmatmul.mubr.f32.gmra.mxu0 %v703
        %v786 = vpop.f32.mrf.mxu0
        %v787 = vadd.f32 %v690, %v786
        %v788 = vpop.f32.mrf.mxu0
        %789 = vdwg.mxu0
        %v790 = vmax.f32 %v772, 0.0
        %v791 = vmax.f32 %v777, 0.0
        %v792 = vmax.f32 %v782, 0.0
        %v793 = vmax.f32 %v787, 0.0
        %v794 = vmin.f32 %v790, 6.0
        %v795 = vmin.f32 %v791, 6.0
        %v796 = vmin.f32 %v792, 6.0
        %v797 = vmin.f32 %v793, 6.0
        %v798 = vld [vmem:[%s8] sm:$0xff]
        %v799 = vld [vmem:[%s9] sm:$0xff]
        %801 = vset.pattern.permute.xlu0 0
        %802 = vperm.xlu0 %801, %v799
        %v803 = vpop.permute.xlu0 %802
        %vm805 = vcmask 261120
        %v807 = vsel %vm805, %v798, 0
        %809 = vmatprep.subr.mxu0 0.0
        %810 = vmatpush1.msra.mxu0 0.0
        %811 = vmatprep.subr.mxu0 0.0
        %812 = vmatpush1.msra.mxu0 0.0
        %813 = vmatprep.subr.mxu0 0.0
        %814 = vmatpush1.msra.mxu0 0.0
        %815 = vmatprep.subr.mxu0 0.0
        %816 = vmatpush1.msra.mxu0 0.0
        %817 = vmatprep.subr.mxu0 0.0
        %818 = vmatpush1.msra.mxu0 0.0
        %819 = vmatprep.subr.mxu0 0.0
        %820 = vmatpush1.msra.mxu0 0.0
        %821 = vmatprep.subr.mxu0 0.0
        %822 = vmatpush1.msra.mxu0 0.0
        %823 = vmatprep.subr.mxu0 0.0
        %824 = vmatpush1.msra.mxu0 0.0
        %825 = vmatprep.subr.mxu0 0.0
        %826 = vmatpush1.msra.mxu0 0.0
        %827 = vmatprep.subr.mxu0 0.0
        %828 = vmatpush1.msra.mxu0 0.0
        %829 = vmatprep.subr.mxu0 0.0
        %830 = vmatpush1.msra.mxu0 0.0
        %831 = vmatprep.subr.mxu0 0.0
        %832 = vmatpush1.msra.mxu0 0.0
        %833 = vmatprep.subr.mxu0 0.0
        %834 = vmatpush1.msra.mxu0 %v797
        %835 = vmatprep.subr.mxu0 0.0
        %836 = vmatpush1.msra.mxu0 %v796
        %837 = vmatprep.subr.mxu0 0.0
        %838 = vmatpush1.msra.mxu0 %v795
        %839 = vmatprep.subr.mxu0 0.0
        %840 = vmatpush1.msra.mxu0 %v794
        %841 = vmatprep.subr.mxu0 0.0
        %842 = vmatpush2.msra.mxu0 0.0
        %843 = vmatprep.subr.mxu0 0.0
        %844 = vmatpush2.msra.mxu0 0.0
        %845 = vmatprep.subr.mxu0 0.0
        %846 = vmatpush2.msra.mxu0 0.0
        %847 = vmatprep.subr.mxu0 0.0
        %848 = vmatpush2.msra.mxu0 0.0
        %849 = vmatprep.subr.mxu0 0.0
        %850 = vmatpush2.msra.mxu0 0.0
        %851 = vmatprep.subr.mxu0 0.0
        %852 = vmatpush2.msra.mxu0 0.0
        %853 = vmatprep.subr.mxu0 0.0
        %854 = vmatpush2.msra.mxu0 0.0
        %855 = vmatprep.subr.mxu0 0.0
        %856 = vmatpush2.msra.mxu0 0.0
        %857 = vmatprep.subr.mxu0 0.0
        %858 = vmatpush2.msra.mxu0 0.0
        %859 = vmatprep.subr.mxu0 0.0
        %860 = vmatpush2.msra.mxu0 0.0
        %861 = vmatprep.subr.mxu0 0.0
        %862 = vmatpush2.msra.mxu0 0.0
        %863 = vmatprep.subr.mxu0 0.0
        %864 = vmatpush2.msra.mxu0 0.0
        %865 = vmatprep.subr.mxu0 0.0
        %866 = vmatpush2.msra.mxu0 0.0
        %867 = vmatprep.subr.mxu0 0.0
        %868 = vmatpush2.msra.mxu0 0.0
        %869 = vmatprep.subr.mxu0 0.0
        %870 = vmatpush2.msra.mxu0 0.0
        %871 = vmatprep.subr.mxu0 0.0
        %872 = vmatpush2.msra.mxu0 0.0
        %873 = vmatprep.mubr.f32.mxu0 0.0
        %874 = vmatmul.mubr.f32.gmra.mxu0 %v807
        %v875 = vpop.f32.mrf.mxu0
        %v876 = vadd.f32 %v803, %v875
        %v877 = vpop.f32.mrf.mxu0
        %878 = vdwg.mxu0
        %v879 = vadd.f32 %v876, %v476
        %880 = vst [vmem:[%s458] sm:$0xff] %v879
        %s881 = sand.u32 %s281, 1
        %s882 = scalar_lea.sflag [#allocation4], %s881
        %s883 = sand.u32 %s281, 1
        %s884 = smul.addr %s883, 8
        %s885 = scalar_lea.vmem [#allocation7], %s884
        // Predicated region
        $region69: #{tpu_custom_call.1} parent=59 // pred_check
          %p886 = pneg %p291
        $region70: #{tpu_custom_call.1} parent=59 // pred_check_branch
          %888 = sbr.rel (%p886) target = $region72
        $region71: #{tpu_custom_call.1} parent=59 // pred_region
          %s890 = ssub.s32 128, 128
          %891 = vsyncadd %s882, %s890
          %s892 = smul.addr %s32, 2
          %s893 = sadd.s32 %s33, %s892
          %s894 = smul.addr %s893, 128
          %s895 = scalar_lea.hbm %s10, %s894
          %s897 = sshll.u32 %s885, 4
          %s898 = int_to_ptr.vmem [resolvable:$true] %s897
          %900 = dma.vmem_to_hbm [thread:$0]  %s898, 128, %s895, %s882
        $region72: #{tpu_custom_call.1} parent=59 // pred_fallthru
          _
      $region60: #{tpu_custom_call.1} parent=5 // pred_fallthru
        _
      %p901 = scmp.le.s32.totalorder 2, %s23
      // Predicated region
      $region73: #{tpu_custom_call.1} parent=5 // pred_check
        %p902 = pneg %p901
      $region74: #{tpu_custom_call.1} parent=5 // pred_check_branch
        %904 = sbr.rel (%p902) target = $region76
      $region75: #{tpu_custom_call.1} parent=5 // pred_region
        %s905 = ssub.s32 %s23, 2
        // Predicated region
        $region77: #{tpu_custom_call.1} parent=75 // pred_check
          %p906 = pneg %p297
        $region78: #{tpu_custom_call.1} parent=75 // pred_check_branch
          %908 = sbr.rel (%p906) target = $region80
        $region79: #{tpu_custom_call.1} parent=75 // pred_region
          %s909 = sand.u32 %s282, 1
          %s910 = scalar_lea.sflag [#allocation4], %s909
          %s911 = sand.u32 %s282, 1
          %s912 = smul.addr %s911, 8
          %s913 = scalar_lea.vmem [#allocation7], %s912
          %914 = dma.done %s910, 128
        $region80: #{tpu_custom_call.1} parent=75 // pred_fallthru
          _
      $region76: #{tpu_custom_call.1} parent=5 // pred_fallthru
        _
    $region6: #{tpu_custom_call.1} parent=1 // loop_footer
      %s27 = sadd.s32 1, %s23
    $region7: #{tpu_custom_call.1} parent=1 // loop_footer_branch
      %22 = sbr.rel target = $region3
    $region8: #{tpu_custom_call.1} parent=1 // loop_exit
      _
    %915 = vsyncpa [#allocation3], 1
    %s916 = scalar_lea.sflag [#allocation3], 1
    %917 = vsyncpa %s916, 1
    %918 = vsyncpa [#allocation6], 1
    %919 = vsyncpa [#allocation4], 1
    %s920 = scalar_lea.sflag [#allocation4], 1
    %921 = vsyncpa %s920, 1

</llo_original>
